<compile_context>
chip_gen: v7x
topology: tpu7x:2x2x1
jax: 0.10.0
libtpu: 0.0.40
codegen_flags: <defaults>
</compile_context>

<pallas_src>
import functools

import jax
import jax.numpy as jnp
from jax import lax
from jax.experimental import pallas as pl
from jax.experimental.pallas import tpu as pltpu

HIDDEN = 64  # fixed by the module: Conv1d(in_dim, 64, 1) -> Conv1d(64, cnn_out, 1)


def landmark_kernel(x_ref,                          # VMEM (1, tile_t, F*N)  lane-dense block
                    m_ref,                          # VMEM (1, tile_t, 1)    mask * inv_cnt / N
                    w1_ref, b1_ref, w2_ref, b2_ref,  # VMEM weights (resident, full blocks)
                    out_ref,                        # VMEM (1, 1, C)  resident accumulator
                    *, n_landmarks, in_dim, total_t, ragged):
    tb = pl.program_id(1)

    @pl.when(tb == 0)
    def _init():
        out_ref[...] = jnp.zeros_like(out_ref)

    _, tile_t, _ = x_ref.shape
    xb = x_ref[0]                                   # (tile_t, F*N)

    if ragged:  # static Python flag: only emitted when T % tile_t != 0
        # Zero out-of-range frames BEFORE the matmul: their VMEM contents are
        # undefined (possibly NaN/Inf) since the HBM block extends past T.
        frame_idx = tb * tile_t + lax.broadcasted_iota(jnp.int32, (tile_t, 1), 0)
        xb = jnp.where(frame_idx < total_t, xb, 0.0)

    # torch x.view(B*T, F, N): each frame's flat (N*F) row reinterpreted as
    # (F, N).  Put landmarks on matmul rows:
    # (tile_t, F, N) -> (tile_t, N, F) -> (tile_t*N, F).
    xm = jnp.transpose(xb.reshape(tile_t, in_dim, n_landmarks), (0, 2, 1))
    xm = xm.reshape(tile_t * n_landmarks, in_dim)

    # 1x1 Conv1d stack == per-landmark MLP: one MXU matmul per layer per tile.
    h = jnp.dot(xm, w1_ref[...], preferred_element_type=jnp.float32) + b1_ref[...]
    h = jnp.maximum(h, 0.0)                         # (tile_t*N, 64)
    y = jnp.dot(h, w2_ref[...], preferred_element_type=jnp.float32) + b2_ref[...]
    y = jnp.maximum(y, 0.0)                         # (tile_t*N, C)

    c = y.shape[-1]
    m = m_ref[0]                                    # (tile_t, 1): mask * 1/(cnt+eps) * 1/N
    weighted = y.reshape(tile_t, n_landmarks, c) * m[:, :, None]
    out_ref[...] += jnp.sum(weighted, axis=(0, 1), keepdims=True)


def landmark_branch(x, mask, w1, b1, w2, b2, *, tile_t=512):
    """x: (B, T, N, F) f32, mask: (B, T), w1: (64, F), b1: (64,),
    w2: (C, 64), b2: (C,).  Returns (B, C) f32."""
    B, T, N, F = x.shape
    H = w1.shape[0]
    C = w2.shape[0]

    # Large frame block to amortise per-step pipeline overhead; sublane-align
    # when it does not span the whole T axis (tile_t is the block's second
    # minor dim after flattening).
    tile_t = max(1, min(tile_t, T))
    if tile_t < T and tile_t % 8 != 0:
        tile_t = min(T, ((tile_t + 7) // 8) * 8)
    num_blocks = pl.cdiv(T, tile_t)
    T_pad = num_blocks * tile_t
    ragged = T_pad != T

    mask_f = mask.astype(jnp.float32)
    inv_cnt = 1.0 / (jnp.sum(mask_f, axis=1) + 1e-8)           # (B,)
    if ragged:
        # Only the tiny (B, T) mask is padded; x is NOT padded (no extra HBM
        # round trip of the dominant tensor) -- the tail is handled in-kernel.
        mask_f = jnp.pad(mask_f, ((0, 0), (0, T_pad - T)))
    # Fold 1/(valid_count+eps) and the 1/N landmark-mean factor into the mask.
    mask_scaled = mask_f[:, :, None] * (inv_cnt[:, None, None] / N)  # (B, T_pad, 1)

    # torch `x.view(B*T, F, N)` is a row-major reinterpretation: this reshape
    # is free and yields a lane-dense (B, T, F*N) layout for the DMA.
    x_flat = x.reshape(B, T, F * N)

    w1t = w1.T                                                 # (F, 64)
    w2t = w2.T                                                 # (64, C)
    b1r = b1.reshape(1, H)
    b2r = b2.reshape(1, C)

    kern = functools.partial(landmark_kernel, n_landmarks=N, in_dim=F,
                             total_t=T, ragged=ragged)

    grid_spec = pltpu.PrefetchScalarGridSpec(
        num_scalar_prefetch=0,
        grid=(B, num_blocks),
        in_specs=[
            pl.BlockSpec((1, tile_t, F * N), lambda b, t: (b, t, 0)),
            pl.BlockSpec((1, tile_t, 1), lambda b, t: (b, t, 0)),
            pl.BlockSpec((F, H), lambda b, t: (0, 0)),
            pl.BlockSpec((1, H), lambda b, t: (0, 0)),
            pl.BlockSpec((H, C), lambda b, t: (0, 0)),
            pl.BlockSpec((1, C), lambda b, t: (0, 0)),
        ],
        # Constant in t -> output block is VMEM-resident across the frame-block
        # axis and is accumulated into directly (no scratch, no finalize).
        out_specs=pl.BlockSpec((1, 1, C), lambda b, t: (b, 0, 0)),
    )

    out3 = pl.pallas_call(
        kern,
        out_shape=jax.ShapeDtypeStruct((B, 1, C), jnp.float32),
        grid_spec=grid_spec,
        # B parallel (megacore / v7x dual-TC); frame-block axis carries the
        # accumulator so it must stay innermost + arbitrary.
        compiler_params=pltpu.CompilerParams(
            dimension_semantics=("parallel", "arbitrary")),
    )(x_flat, mask_scaled, w1t, b1r, w2t, b2r)
    return out3.reshape(B, C)


def ref_forward(x, mask, w1, b1, w2, b2):
    """Pure-JAX reference mirroring the PyTorch forward exactly."""
    B, T, N, F = x.shape
    xr = x.reshape(B * T, F, N)                                    # torch .view
    h = jnp.maximum(jnp.einsum('of,bfn->bon', w1, xr) + b1[None, :, None], 0.0)
    y = jnp.maximum(jnp.einsum('co,bon->bcn', w2, h) + b2[None, :, None], 0.0)
    feat = jnp.mean(y, axis=2).reshape(B, T, -1)
    m = mask[..., None].astype(jnp.float32)
    sum_x = jnp.sum(feat * m, axis=1)
    cnt = jnp.sum(m, axis=1)
    return sum_x / (cnt + 1e-8)


if __name__ == "__main__":
    B, T, N, F, C = 2, 8, 16, 4, 32   # batch, frames, landmarks, in_dim, cnn_out

    key = jax.random.PRNGKey(0)
    k1, k2, k3, k4, k5 = jax.random.split(key, 5)
    x = jax.random.normal(k1, (B, T, N, F), dtype=jnp.float32)
    # binary validity mask: first valid_len[b] frames are valid
    valid_len = jnp.array([6, 8], dtype=jnp.int32)
    mask = (jnp.arange(T)[None, :] < valid_len[:, None]).astype(jnp.float32)

    # deterministic synthetic parameters (shapes from nn.Conv1d(k=1) layers)
    w1 = jax.random.normal(k2, (HIDDEN, F), dtype=jnp.float32) * 0.1
    b1 = jax.random.normal(k3, (HIDDEN,), dtype=jnp.float32) * 0.1
    w2 = jax.random.normal(k4, (C, HIDDEN), dtype=jnp.float32) * 0.1
    b2 = jax.random.normal(k5, (C,), dtype=jnp.float32) * 0.1

    out = landmark_branch(x, mask, w1, b1, w2, b2)
    out = jax.block_until_ready(out)
    ref = ref_forward(x, mask, w1, b1, w2, b2)
    assert out.shape == (B, C)
    assert jnp.allclose(out, ref, atol=1e-4, rtol=1e-4), (out, ref)

    # Ragged-T case (T % tile_t != 0): exercises the no-pad in-kernel tail
    # masking path (x is never padded in HBM).
    T2 = 11
    x2 = jax.random.normal(jax.random.PRNGKey(1), (B, T2, N, F), dtype=jnp.float32)
    valid2 = jnp.array([9, 11], dtype=jnp.int32)
    mask2 = (jnp.arange(T2)[None, :] < valid2[:, None]).astype(jnp.float32)
    out2 = jax.block_until_ready(landmark_branch(x2, mask2, w1, b1, w2, b2, tile_t=8))
    ref2 = ref_forward(x2, mask2, w1, b1, w2, b2)
    assert jnp.allclose(out2, ref2, atol=1e-4, rtol=1e-4), (out2, ref2)

    print("KERNEL_OK")
</pallas_src>

<mosaic_0001>
module attributes {stable_mosaic.version = 11 : i64} {
  func.func @landmark_kernel(%arg0: i32, %arg1: i32, %arg2: memref<1x8x64xf32, #tpu.memory_space<vmem>>, %arg3: memref<1x8x1xf32, #tpu.memory_space<vmem>>, %arg4: memref<4x64xf32, #tpu.memory_space<vmem>>, %arg5: memref<1x64xf32, #tpu.memory_space<vmem>>, %arg6: memref<64x32xf32, #tpu.memory_space<vmem>>, %arg7: memref<1x32xf32, #tpu.memory_space<vmem>>, %arg8: memref<1x1x32xf32, #tpu.memory_space<vmem>>) attributes {dimension_semantics = [#tpu.dimension_semantics<parallel>, #tpu.dimension_semantics<arbitrary>], iteration_bounds = array<i64: 2, 1>, scalar_prefetch = 0 : i64, scratch_operands = 0 : i64, tpu.core_type = #tpu.core_type<tc>, window_params = [{transform_indices = @transform_0, window_bounds = array<i64: 1, 8, 64>}, {transform_indices = @transform_1, window_bounds = array<i64: 1, 8, 1>}, {pipeline_mode = #tpu.pipeline_mode<synchronous>, transform_indices = @transform_2, window_bounds = array<i64: 4, 64>}, {pipeline_mode = #tpu.pipeline_mode<synchronous>, transform_indices = @transform_3, window_bounds = array<i64: 1, 64>}, {pipeline_mode = #tpu.pipeline_mode<synchronous>, transform_indices = @transform_4, window_bounds = array<i64: 64, 32>}, {pipeline_mode = #tpu.pipeline_mode<synchronous>, transform_indices = @transform_5, window_bounds = array<i64: 1, 32>}, {transform_indices = @transform_6, window_bounds = array<i64: 1, 1, 32>}]} {
    %c0_i32 = arith.constant 0 : i32
    %0 = arith.cmpi eq, %arg1, %c0_i32 : i32
    %1 = arith.extui %0 : i1 to i32
    %c0_i32_0 = arith.constant 0 : i32
    %2 = arith.cmpi ne, %1, %c0_i32_0 : i32
    scf.if %2 {
      %cst_24 = arith.constant 0.000000e+00 : f32
      %33 = vector.broadcast %cst_24 : f32 to vector<1x1x32xf32>
      %c0_25 = arith.constant 0 : index
      %c0_26 = arith.constant 0 : index
      %c0_27 = arith.constant 0 : index
      %34 = vector.load %arg8[%c0_25, %c0_26, %c0_27] : memref<1x1x32xf32, #tpu.memory_space<vmem>>, vector<1x1x32xf32>
      tpu.vector_store %arg8[%c0_25, %c0_26, %c0_27], %33 {strides = array<i32>} : memref<1x1x32xf32, #tpu.memory_space<vmem>>, vector<1x1x32xf32>,
    } else {
    }
    %c0 = arith.constant 0 : index
    %c0_1 = arith.constant 0 : index
    %c0_2 = arith.constant 0 : index
    %3 = vector.load %arg2[%c0, %c0_1, %c0_2] : memref<1x8x64xf32, #tpu.memory_space<vmem>>, vector<1x8x64xf32>
    %4 = vector.shape_cast %3 : vector<1x8x64xf32> to vector<8x64xf32>
    %5 = vector.shape_cast %4 : vector<8x64xf32> to vector<8x4x16xf32>
    %6 = tpu.transpose %5, [0, 2, 1] : vector<8x4x16xf32> -> vector<8x16x4xf32>
    %7 = vector.shape_cast %6 : vector<8x16x4xf32> to vector<128x4xf32>
    %c0_3 = arith.constant 0 : index
    %c0_4 = arith.constant 0 : index
    %8 = vector.load %arg4[%c0_3, %c0_4] : memref<4x64xf32, #tpu.memory_space<vmem>>, vector<4x64xf32>
    %cst = arith.constant dense<0.000000e+00> : vector<128x64xf32>
    %9 = tpu.matmul %7, %8, %cst {dimension_numbers = #tpu.dot_dimension_numbers<[1], [0], [0], [1], [0, 0, 1, 1], [], []>} : vector<128x4xf32>, vector<4x64xf32>, vector<128x64xf32> -> vector<128x64xf32>
    %c0_5 = arith.constant 0 : index
    %c0_6 = arith.constant 0 : index
    %10 = vector.load %arg5[%c0_5, %c0_6] : memref<1x64xf32, #tpu.memory_space<vmem>>, vector<1x64xf32>
    %11 = vector.broadcast %10 : vector<1x64xf32> to vector<128x64xf32>
    %12 = arith.addf %9, %11 : vector<128x64xf32>
    %cst_7 = arith.constant 0.000000e+00 : f32
    %13 = vector.broadcast %cst_7 : f32 to vector<128x64xf32>
    %14 = arith.maximumf %12, %13 : vector<128x64xf32>
    %c0_8 = arith.constant 0 : index
    %c0_9 = arith.constant 0 : index
    %15 = vector.load %arg6[%c0_8, %c0_9] : memref<64x32xf32, #tpu.memory_space<vmem>>, vector<64x32xf32>
    %cst_10 = arith.constant dense<0.000000e+00> : vector<128x32xf32>
    %16 = tpu.matmul %14, %15, %cst_10 {dimension_numbers = #tpu.dot_dimension_numbers<[1], [0], [0], [1], [0, 0, 1, 1], [], []>} : vector<128x64xf32>, vector<64x32xf32>, vector<128x32xf32> -> vector<128x32xf32>
    %c0_11 = arith.constant 0 : index
    %c0_12 = arith.constant 0 : index
    %17 = vector.load %arg7[%c0_11, %c0_12] : memref<1x32xf32, #tpu.memory_space<vmem>>, vector<1x32xf32>
    %18 = vector.broadcast %17 : vector<1x32xf32> to vector<128x32xf32>
    %19 = arith.addf %16, %18 : vector<128x32xf32>
    %cst_13 = arith.constant 0.000000e+00 : f32
    %20 = vector.broadcast %cst_13 : f32 to vector<128x32xf32>
    %21 = arith.maximumf %19, %20 : vector<128x32xf32>
    %c0_14 = arith.constant 0 : index
    %c0_15 = arith.constant 0 : index
    %c0_16 = arith.constant 0 : index
    %22 = vector.load %arg3[%c0_14, %c0_15, %c0_16] : memref<1x8x1xf32, #tpu.memory_space<vmem>>, vector<1x8x1xf32>
    %23 = vector.shape_cast %22 : vector<1x8x1xf32> to vector<8x1xf32>
    %24 = vector.shape_cast %21 : vector<128x32xf32> to vector<8x16x32xf32>
    %25 = vector.shape_cast %23 : vector<8x1xf32> to vector<8x1x1xf32>
    %26 = vector.broadcast %25 : vector<8x1x1xf32> to vector<8x16x32xf32>
    %27 = arith.mulf %24, %26 : vector<8x16x32xf32>
    %c0_17 = arith.constant 0 : index
    %c0_18 = arith.constant 0 : index
    %c0_19 = arith.constant 0 : index
    %28 = vector.load %arg8[%c0_17, %c0_18, %c0_19] : memref<1x1x32xf32, #tpu.memory_space<vmem>>, vector<1x1x32xf32>
    %cst_20 = arith.constant dense<0.000000e+00> : vector<32xf32>
    %29 = vector.multi_reduction <add>, %27, %cst_20 [0, 1] : vector<8x16x32xf32> to vector<32xf32>
    %30 = vector.shape_cast %29 : vector<32xf32> to vector<1x1x32xf32>
    %31 = arith.addf %28, %30 : vector<1x1x32xf32>
    %c0_21 = arith.constant 0 : index
    %c0_22 = arith.constant 0 : index
    %c0_23 = arith.constant 0 : index
    %32 = vector.load %arg8[%c0_21, %c0_22, %c0_23] : memref<1x1x32xf32, #tpu.memory_space<vmem>>, vector<1x1x32xf32>
    tpu.vector_store %arg8[%c0_21, %c0_22, %c0_23], %31 {strides = array<i32>} : memref<1x1x32xf32, #tpu.memory_space<vmem>>, vector<1x1x32xf32>,
    return
  }
  func.func @transform_0(%arg0: i32, %arg1: i32) -> (i32, i32, i32) {
    %c0_i32 = arith.constant 0 : i32
    %c0_i32_0 = arith.constant 0 : i32
    return %arg0, %arg1, %c0_i32 : i32, i32, i32
  }
  func.func @transform_1(%arg0: i32, %arg1: i32) -> (i32, i32, i32) {
    %c0_i32 = arith.constant 0 : i32
    %c0_i32_0 = arith.constant 0 : i32
    return %arg0, %arg1, %c0_i32 : i32, i32, i32
  }
  func.func @transform_2(%arg0: i32, %arg1: i32) -> (i32, i32) {
    %c0_i32 = arith.constant 0 : i32
    %c0_i32_0 = arith.constant 0 : i32
    %c0_i32_1 = arith.constant 0 : i32
    return %c0_i32, %c0_i32_0 : i32, i32
  }
  func.func @transform_3(%arg0: i32, %arg1: i32) -> (i32, i32) {
    %c0_i32 = arith.constant 0 : i32
    %c0_i32_0 = arith.constant 0 : i32
    %c0_i32_1 = arith.constant 0 : i32
    return %c0_i32, %c0_i32_0 : i32, i32
  }
  func.func @transform_4(%arg0: i32, %arg1: i32) -> (i32, i32) {
    %c0_i32 = arith.constant 0 : i32
    %c0_i32_0 = arith.constant 0 : i32
    %c0_i32_1 = arith.constant 0 : i32
    return %c0_i32, %c0_i32_0 : i32, i32
  }
  func.func @transform_5(%arg0: i32, %arg1: i32) -> (i32, i32) {
    %c0_i32 = arith.constant 0 : i32
    %c0_i32_0 = arith.constant 0 : i32
    %c0_i32_1 = arith.constant 0 : i32
    return %c0_i32, %c0_i32_0 : i32, i32
  }
  func.func @transform_6(%arg0: i32, %arg1: i32) -> (i32, i32, i32) {
    %c0_i32 = arith.constant 0 : i32
    %c0_i32_0 = arith.constant 0 : i32
    %c0_i32_1 = arith.constant 0 : i32
    return %arg0, %c0_i32, %c0_i32_0 : i32, i32, i32
  }
}

</mosaic_0001>

<llo_original>
// kernel: tpu_custom_call.1
$region0: #{tpu_custom_call.1}
  #allocation0 [shape = 'u32[]', space=smem, size = 0x4, offset = 0x4, fixed_abs, tag = 'smem constant byte address 0x4 - core index']
  #allocation1 [shape = 'u32[144,128]{1,0:T(1,128)}', space=vmem, size = 0x12000, scoped, tag = 'internal scratch']
  %s0 = inlined_call_operand.vmem [shape: f32[2,8,64], index: 0, kind: input, shape index: {}]
  %s1 = inlined_call_operand.vmem [shape: f32[2,8,1], index: 1, kind: input, shape index: {}]
  %s2 = inlined_call_operand.vmem [shape: f32[4,64], index: 2, kind: input, shape index: {}]
  %s3 = inlined_call_operand.vmem [shape: f32[1,64], index: 3, kind: input, shape index: {}]
  %s4 = inlined_call_operand.vmem [shape: f32[64,32], index: 4, kind: input, shape index: {}]
  %s5 = inlined_call_operand.vmem [shape: f32[1,32], index: 5, kind: input, shape index: {}]
  %s6 = inlined_call_operand.hbm [shape: f32[2,1,32], index: 6, kind: output, shape index: {}]
  %s7 = sld [smem:[#allocation0]]
  $region61: #{tpu_custom_call.1} parent=0
    _
  %s9 = ssub.s32 1, %s7
  %s10 = scalar_select 0, %s9, %s7
  $region1: #{tpu_custom_call.1} parent=0
    #allocation2 [shape = 'u8[1024]{0}', space=vmem, size = 0x400, scoped, tag = 'output window, operand 0']
    #allocation3 [shape = 's32[2]{0}', space=sflag, size = 0x8, scoped, tag = 'scoped memory for tpu_custom_call.1']
    %11 = vsyncpa [#allocation3], 0
    %s12 = scalar_lea.sflag [#allocation3], 1
    %13 = vsyncpa %s12, 0
    loop: start=0, step=1, limit=4
    $region2: #{tpu_custom_call.1} parent=1 // loop_pre_header
      _
    $region3: #{tpu_custom_call.1} parent=1 // loop_header
      %s15 = sphi 0, %s19
      %p16 = scmp.ge.s32.totalorder %s15, 4
      %s22 = sphi 0, %s34
      %s23 = sphi 0, %s30
      %s24 = sphi 0, %s22
      %s25 = sphi 0, %s23
      %s26 = sphi 0, %s24
      %s27 = sphi 0, %s25
      %s39 = sphi 0, %s41
      %s42 = sphi 0, %s39
      %s43 = sphi 0, %s42
      %s59 = sphi 0, %s43
      %s67 = sphi 0, %s69
      %s70 = sphi 0, %s67
      %s71 = sphi 0, %s70
      %s87 = sphi 0, %s71
      %s91 = sphi 0, %s91
      %s93 = sphi 0, %s91
      %s94 = sphi 0, %s93
      %s108 = sphi 0, %s94
      %s112 = sphi 0, %s112
      %s114 = sphi 0, %s112
      %s115 = sphi 0, %s114
      %s129 = sphi 0, %s115
      %s133 = sphi 0, %s133
      %s135 = sphi 0, %s133
      %s136 = sphi 0, %s135
      %s150 = sphi 0, %s136
      %s154 = sphi 0, %s154
      %s156 = sphi 0, %s154
      %s157 = sphi 0, %s156
      %s171 = sphi 0, %s157
      %s177 = sphi 0, %s179
      %s180 = sphi 0, %s177
      %s181 = sphi 0, %s180
      %s197 = sphi 0, %s181
    $region4: #{tpu_custom_call.1} parent=1 // loop_header_branch
      %18 = sbr.rel (%p16) target = $region8
    $region5: #{tpu_custom_call.1} parent=1 // loop_body
      %s20 = ssub.s32 %s15, 1
      %s21 = ssub.s32 %s15, 2
      %s28 = sadd.s32 1, %s23
      %p29 = scmp.ge.s32.totalorder %s28, 1
      %s30 = scalar_select %p29, 0, %s28
      %s31 = sadd.s32 1, %s22
      %s32 = scalar_select %p29, %s31, %s22
      %p33 = scmp.ge.s32.totalorder %s32, 2
      %s34 = scalar_select %p33, 0, %s32
      %s35 = ssub.s32 %s22, %s34
      %s36 = ssub.s32 %s23, %s30
      %s37 = sor.u32 %s35, %s36
      %p38 = scmp.eq.s32.totalorder %s37, 0
      %s40 = sadd.s32 %s39, 1
      %s41 = scalar_select %p38, %s39, %s40
      %p44 = pneg %p38
      %p45 = scmp.eq.s32.totalorder %s15, 1
      %p46 = por %p44, %p45
      %p47 = scmp.ne.s32.totalorder %s39, %s42
      %p48 = scmp.eq.s32.totalorder %s15, 0
      %p49 = por %p47, %p48
      %p50 = scmp.ne.s32.totalorder %s39, %s42
      %p51 = scmp.eq.s32.totalorder %s20, 1
      %p52 = por %p50, %p51
      %p53 = scmp.ne.s32.totalorder %s42, %s43
      %p54 = scmp.eq.s32.totalorder %s20, 0
      %p55 = por %p53, %p54
      %p56 = scmp.ne.s32.totalorder %s42, %s43
      %p57 = scmp.eq.s32.totalorder %s21, 1
      %p58 = por %p56, %p57
      %p60 = scmp.ne.s32.totalorder %s43, %s59
      %p61 = scmp.eq.s32.totalorder %s21, 0
      %p62 = por %p60, %p61
      %s63 = ssub.s32 %s22, %s34
      %s64 = ssub.s32 %s23, %s30
      %s65 = sor.u32 %s63, %s64
      %p66 = scmp.eq.s32.totalorder %s65, 0
      %s68 = sadd.s32 %s67, 1
      %s69 = scalar_select %p66, %s67, %s68
      %p72 = pneg %p66
      %p73 = scmp.eq.s32.totalorder %s15, 1
      %p74 = por %p72, %p73
      %p75 = scmp.ne.s32.totalorder %s67, %s70
      %p76 = scmp.eq.s32.totalorder %s15, 0
      %p77 = por %p75, %p76
      %p78 = scmp.ne.s32.totalorder %s67, %s70
      %p79 = scmp.eq.s32.totalorder %s20, 1
      %p80 = por %p78, %p79
      %p81 = scmp.ne.s32.totalorder %s70, %s71
      %p82 = scmp.eq.s32.totalorder %s20, 0
      %p83 = por %p81, %p82
      %p84 = scmp.ne.s32.totalorder %s70, %s71
      %p85 = scmp.eq.s32.totalorder %s21, 1
      %p86 = por %p84, %p85
      %p88 = scmp.ne.s32.totalorder %s71, %s87
      %p89 = scmp.eq.s32.totalorder %s21, 0
      %p90 = por %p88, %p89
      %s92 = sadd.s32 %s91, 1
      %p95 = scmp.eq.s32.totalorder %s15, 1
      %p96 = scmp.ne.s32.totalorder %s91, %s93
      %p97 = scmp.eq.s32.totalorder %s15, 0
      %p98 = por %p96, %p97
      %p99 = scmp.ne.s32.totalorder %s91, %s93
      %p100 = scmp.eq.s32.totalorder %s20, 1
      %p101 = por %p99, %p100
      %p102 = scmp.ne.s32.totalorder %s93, %s94
      %p103 = scmp.eq.s32.totalorder %s20, 0
      %p104 = por %p102, %p103
      %p105 = scmp.ne.s32.totalorder %s93, %s94
      %p106 = scmp.eq.s32.totalorder %s21, 1
      %p107 = por %p105, %p106
      %p109 = scmp.ne.s32.totalorder %s94, %s108
      %p110 = scmp.eq.s32.totalorder %s21, 0
      %p111 = por %p109, %p110
      %s113 = sadd.s32 %s112, 1
      %p116 = scmp.eq.s32.totalorder %s15, 1
      %p117 = scmp.ne.s32.totalorder %s112, %s114
      %p118 = scmp.eq.s32.totalorder %s15, 0
      %p119 = por %p117, %p118
      %p120 = scmp.ne.s32.totalorder %s112, %s114
      %p121 = scmp.eq.s32.totalorder %s20, 1
      %p122 = por %p120, %p121
      %p123 = scmp.ne.s32.totalorder %s114, %s115
      %p124 = scmp.eq.s32.totalorder %s20, 0
      %p125 = por %p123, %p124
      %p126 = scmp.ne.s32.totalorder %s114, %s115
      %p127 = scmp.eq.s32.totalorder %s21, 1
      %p128 = por %p126, %p127
      %p130 = scmp.ne.s32.totalorder %s115, %s129
      %p131 = scmp.eq.s32.totalorder %s21, 0
      %p132 = por %p130, %p131
      %s134 = sadd.s32 %s133, 1
      %p137 = scmp.eq.s32.totalorder %s15, 1
      %p138 = scmp.ne.s32.totalorder %s133, %s135
      %p139 = scmp.eq.s32.totalorder %s15, 0
      %p140 = por %p138, %p139
      %p141 = scmp.ne.s32.totalorder %s133, %s135
      %p142 = scmp.eq.s32.totalorder %s20, 1
      %p143 = por %p141, %p142
      %p144 = scmp.ne.s32.totalorder %s135, %s136
      %p145 = scmp.eq.s32.totalorder %s20, 0
      %p146 = por %p144, %p145
      %p147 = scmp.ne.s32.totalorder %s135, %s136
      %p148 = scmp.eq.s32.totalorder %s21, 1
      %p149 = por %p147, %p148
      %p151 = scmp.ne.s32.totalorder %s136, %s150
      %p152 = scmp.eq.s32.totalorder %s21, 0
      %p153 = por %p151, %p152
      %s155 = sadd.s32 %s154, 1
      %p158 = scmp.eq.s32.totalorder %s15, 1
      %p159 = scmp.ne.s32.totalorder %s154, %s156
      %p160 = scmp.eq.s32.totalorder %s15, 0
      %p161 = por %p159, %p160
      %p162 = scmp.ne.s32.totalorder %s154, %s156
      %p163 = scmp.eq.s32.totalorder %s20, 1
      %p164 = por %p162, %p163
      %p165 = scmp.ne.s32.totalorder %s156, %s157
      %p166 = scmp.eq.s32.totalorder %s20, 0
      %p167 = por %p165, %p166
      %p168 = scmp.ne.s32.totalorder %s156, %s157
      %p169 = scmp.eq.s32.totalorder %s21, 1
      %p170 = por %p168, %p169
      %p172 = scmp.ne.s32.totalorder %s157, %s171
      %p173 = scmp.eq.s32.totalorder %s21, 0
      %p174 = por %p172, %p173
      %s175 = ssub.s32 %s22, %s34
      %p176 = scmp.eq.s32.totalorder %s175, 0
      %s178 = sadd.s32 %s177, 1
      %s179 = scalar_select %p176, %s177, %s178
      %p182 = pneg %p176
      %p183 = scmp.eq.s32.totalorder %s15, 1
      %p184 = por %p182, %p183
      %p185 = scmp.ne.s32.totalorder %s177, %s180
      %p186 = scmp.eq.s32.totalorder %s15, 0
      %p187 = por %p185, %p186
      %p188 = scmp.ne.s32.totalorder %s177, %s180
      %p189 = scmp.eq.s32.totalorder %s20, 1
      %p190 = por %p188, %p189
      %p191 = scmp.ne.s32.totalorder %s180, %s181
      %p192 = scmp.eq.s32.totalorder %s20, 0
      %p193 = por %p191, %p192
      %p194 = scmp.ne.s32.totalorder %s180, %s181
      %p195 = scmp.eq.s32.totalorder %s21, 1
      %p196 = por %p194, %p195
      %p198 = scmp.ne.s32.totalorder %s181, %s197
      %p199 = scmp.eq.s32.totalorder %s21, 0
      %p200 = por %p198, %p199
      %p201 = scmp.le.s32.totalorder 1, %s15
      %p202 = scmp.lt.s32.totalorder %s15, 3
      %p203 = pnand %p201, %p202
      %p204 = pneg %p203
      // Predicated region
      $region9: #{tpu_custom_call.1} parent=5 // pred_check
        _
      $region10: #{tpu_custom_call.1} parent=5 // pred_check_branch
        %206 = sbr.rel (%p203) target = $region12
      $region11: #{tpu_custom_call.1} parent=5 // pred_region
        %s207 = ssub.s32 %s15, 1
        // Predicated region
        $region13: #{tpu_custom_call.1} parent=11 // pred_check
          %p208 = pneg %p104
        $region14: #{tpu_custom_call.1} parent=11 // pred_check_branch
          %210 = sbr.rel (%p208) target = $region16
        $region15: #{tpu_custom_call.1} parent=11 // pred_region
          _
        $region16: #{tpu_custom_call.1} parent=11 // pred_fallthru
          _
        // Predicated region
        $region17: #{tpu_custom_call.1} parent=11 // pred_check
          %p211 = pneg %p125
        $region18: #{tpu_custom_call.1} parent=11 // pred_check_branch
          %213 = sbr.rel (%p211) target = $region20
        $region19: #{tpu_custom_call.1} parent=11 // pred_region
          _
        $region20: #{tpu_custom_call.1} parent=11 // pred_fallthru
          _
        // Predicated region
        $region21: #{tpu_custom_call.1} parent=11 // pred_check
          %p214 = pneg %p146
        $region22: #{tpu_custom_call.1} parent=11 // pred_check_branch
          %216 = sbr.rel (%p214) target = $region24
        $region23: #{tpu_custom_call.1} parent=11 // pred_region
          _
        $region24: #{tpu_custom_call.1} parent=11 // pred_fallthru
          _
        // Predicated region
        $region25: #{tpu_custom_call.1} parent=11 // pred_check
          %p217 = pneg %p167
        $region26: #{tpu_custom_call.1} parent=11 // pred_check_branch
          %219 = sbr.rel (%p217) target = $region28
        $region27: #{tpu_custom_call.1} parent=11 // pred_region
          _
        $region28: #{tpu_custom_call.1} parent=11 // pred_fallthru
          _
      $region12: #{tpu_custom_call.1} parent=5 // pred_fallthru
        _
      %p220 = scmp.lt.s32.totalorder %s15, 2
      // Predicated region
      $region29: #{tpu_custom_call.1} parent=5 // pred_check
        %p221 = pneg %p220
      $region30: #{tpu_custom_call.1} parent=5 // pred_check_branch
        %223 = sbr.rel (%p221) target = $region32
      $region31: #{tpu_custom_call.1} parent=5 // pred_region
        // Predicated region
        $region33: #{tpu_custom_call.1} parent=31 // pred_check
          %p224 = pneg %p49
        $region34: #{tpu_custom_call.1} parent=31 // pred_check_branch
          %226 = sbr.rel (%p224) target = $region36
        $region35: #{tpu_custom_call.1} parent=31 // pred_region
          %p227 = scmp.lt.s32.totalorder %s22, 1
          %s228 = scalar_select %p227, %s22, 1
          %p229 = scmp.lt.s32.totalorder %s23, 0
          %s230 = scalar_select %p229, %s23, 0
          %s231 = sadd.s32 %s230, %s228
          %s232 = smul.addr %s231, 8
          %s233 = scalar_lea.vmem %s0, %s232
        $region36: #{tpu_custom_call.1} parent=31 // pred_fallthru
          _
        // Predicated region
        $region37: #{tpu_custom_call.1} parent=31 // pred_check
          %p234 = pneg %p77
        $region38: #{tpu_custom_call.1} parent=31 // pred_check_branch
          %236 = sbr.rel (%p234) target = $region40
        $region39: #{tpu_custom_call.1} parent=31 // pred_region
          %p237 = scmp.lt.s32.totalorder %s22, 1
          %s238 = scalar_select %p237, %s22, 1
          %p239 = scmp.lt.s32.totalorder %s23, 0
          %s240 = scalar_select %p239, %s23, 0
          %s241 = sadd.s32 %s240, %s238
          %s242 = smul.addr %s241, 8
          %s243 = scalar_lea.vmem %s1, %s242
        $region40: #{tpu_custom_call.1} parent=31 // pred_fallthru
          _
      $region32: #{tpu_custom_call.1} parent=5 // pred_fallthru
        _
      %p244 = scmp.le.s32.totalorder 1, %s15
      %p245 = scmp.lt.s32.totalorder %s15, 3
      %p246 = pnand %p244, %p245
      %p247 = pneg %p246
      // Predicated region
      $region41: #{tpu_custom_call.1} parent=5 // pred_check
        _
      $region42: #{tpu_custom_call.1} parent=5 // pred_check_branch
        %249 = sbr.rel (%p246) target = $region44
      $region43: #{tpu_custom_call.1} parent=5 // pred_region
        %s250 = ssub.s32 %s15, 1
        %p251 = scmp.lt.s32.totalorder %s24, 1
        %s252 = scalar_select %p251, %s24, 1
        %p253 = scmp.lt.s32.totalorder %s25, 0
        %s254 = scalar_select %p253, %s25, 0
        %s255 = sadd.s32 %s254, %s252
        %s256 = smul.addr %s255, 8
        %s257 = scalar_lea.vmem %s0, %s256
        %p258 = pneg %p55
        %p259 = pneg %p52
        %p260 = scmp.lt.s32.totalorder %s24, 1
        %s261 = scalar_select %p260, %s24, 1
        %p262 = scmp.lt.s32.totalorder %s25, 0
        %s263 = scalar_select %p262, %s25, 0
        %s264 = sadd.s32 %s263, %s261
        %s265 = smul.addr %s264, 8
        %s266 = scalar_lea.vmem %s1, %s265
        %p267 = pneg %p83
        %p268 = pneg %p80
        %p269 = pneg %p104
        %p270 = pneg %p101
        %p271 = pneg %p125
        %p272 = pneg %p122
        %p273 = pneg %p146
        %p274 = pneg %p143
        %p275 = pneg %p167
        %p276 = pneg %p164
        %p277 = pneg %p193
        %p278 = pneg %p190
        %s279 = sand.u32 %s180, 1
        %s280 = scalar_lea.sflag [#allocation3], %s279
        %s281 = sand.u32 %s180, 1
        %s282 = scalar_lea.vmem [#allocation2], %s281
        %p283 = scmp.lt.s32.totalorder %s24, 1
        %s284 = scalar_select %p283, %s24, 1
        %p285 = scmp.lt.s32.totalorder %s25, 0
        %s286 = scalar_select %p285, %s25, 0
        %s287 = sadd.s32 %s286, %s284
        %s288 = smul.addr %s287, 8
        %s289 = scalar_lea.vmem %s0, %s288
        %p290 = scmp.lt.s32.totalorder %s24, 1
        %s291 = scalar_select %p290, %s24, 1
        %p292 = scmp.lt.s32.totalorder %s25, 0
        %s293 = scalar_select %p292, %s25, 0
        %s294 = sadd.s32 %s293, %s291
        %s295 = smul.addr %s294, 8
        %s296 = scalar_lea.vmem %s1, %s295
        %p297 = scmp.eq.s32.totalorder %s25, 0
        // Predicated region
        $region45: #{tpu_custom_call.1} parent=43 // pred_check
          %p298 = pneg %p297
        $region46: #{tpu_custom_call.1} parent=43 // pred_check_branch
          %300 = sbr.rel (%p298) target = $region48
        $region47: #{tpu_custom_call.1} parent=43 // pred_region
          %vm301 = vcmask 253952
          %302 = vst.msk [vmem:[%s282] sm:$0x1] %vm301, 0.0
        $region48: #{tpu_custom_call.1} parent=43 // pred_fallthru
          _
        %v303 = vld [vmem:[%s289] sm:$0xff]
        %305 = vrot.lane.b32.xlu0 %v303, 112
        %v306 = vpop.permute.xlu0 %305
        %308 = vrot.lane.b32.xlu0 %v303, 96
        %v309 = vpop.permute.xlu0 %308
        %311 = vrot.lane.b32.xlu0 %v303, 80
        %v312 = vpop.permute.xlu0 %311
        %v314 = vcombine.low %v303, %v309
        %v315 = vcombine.high %v303, %v309
        %v317 = vunpack.c.l.s4 1983009808
        %v318 = vunpack.c.0.s8 %v317
        %v319 = vlaneseq
        %v320 = vshrl.u32 %v319, 7
        %v321 = vsub.s32 %v318, %v320
        %v322 = vrot.slane %v314, %v321
        %v324 = vunpack.c.l.s4 1983009808
        %v325 = vunpack.c.0.s8 %v324
        %v326 = vlaneseq
        %v327 = vshrl.u32 %v326, 7
        %v328 = vsub.s32 %v325, %v327
        %v329 = vrot.slane %v315, %v328
        %v330 = vcombine.low %v306, %v312
        %v331 = vcombine.high %v306, %v312
        %v333 = vunpack.c.l.s4 1983009808
        %v334 = vunpack.c.0.s8 %v333
        %v335 = vlaneseq
        %v336 = vshrl.u32 %v335, 7
        %v337 = vsub.s32 %v334, %v336
        %v338 = vrot.slane %v330, %v337
        %v340 = vunpack.c.l.s4 1983009808
        %v341 = vunpack.c.0.s8 %v340
        %v342 = vlaneseq
        %v343 = vshrl.u32 %v342, 7
        %v344 = vsub.s32 %v341, %v343
        %v345 = vrot.slane %v331, %v344
        %v346 = vcombine.low %v322, %v338
        %v347 = vcombine.high %v322, %v338
        %v349 = vunpack.c.l.s4 1934713408
        %v350 = vunpack.c.0.s8 %v349
        %v351 = vlaneseq
        %v352 = vshrl.u32 %v351, 7
        %v353 = vsub.s32 %v350, %v352
        %v354 = vrot.slane %v346, %v353
        %v356 = vunpack.c.l.s4 1934713408
        %v357 = vunpack.c.0.s8 %v356
        %v358 = vlaneseq
        %v359 = vshrl.u32 %v358, 7
        %v360 = vsub.s32 %v357, %v359
        %v361 = vrot.slane %v347, %v360
        %v362 = vcombine.low %v329, %v345
        %v363 = vcombine.high %v329, %v345
        %v365 = vunpack.c.l.s4 1934713408
        %v366 = vunpack.c.0.s8 %v365
        %v367 = vlaneseq
        %v368 = vshrl.u32 %v367, 7
        %v369 = vsub.s32 %v366, %v368
        %v370 = vrot.slane %v362, %v369
        %v372 = vunpack.c.l.s4 1934713408
        %v373 = vunpack.c.0.s8 %v372
        %v374 = vlaneseq
        %v375 = vshrl.u32 %v374, 7
        %v376 = vsub.s32 %v373, %v375
        %v377 = vrot.slane %v363, %v376
        %v378 = vcombine.high %v354, 0.0
        %v379 = vcombine.high %v361, 0.0
        %v380 = vcombine.high %v370, 0.0
        %v381 = vcombine.high %v377, 0.0
        %382 = vxpose.xlu0.b32.start [1/16] %v354, 128
        %383 = vxpose.xlu0.b32.cont [2/16] 0.0, 128
        %384 = vxpose.xlu0.b32.cont [3/16] 0.0, 128
        %385 = vxpose.xlu0.b32.cont [4/16] 0.0, 128
        %386 = vxpose.xlu0.b32.cont [5/16] 0.0, 128
        %387 = vxpose.xlu0.b32.cont [6/16] 0.0, 128
        %388 = vxpose.xlu0.b32.cont [7/16] 0.0, 128
        %389 = vxpose.xlu0.b32.cont [8/16] 0.0, 128
        %390 = vxpose.xlu0.b32.cont [9/16] 0.0, 128
        %391 = vxpose.xlu0.b32.cont [10/16] 0.0, 128
        %392 = vxpose.xlu0.b32.cont [11/16] 0.0, 128
        %393 = vxpose.xlu0.b32.cont [12/16] 0.0, 128
        %394 = vxpose.xlu0.b32.cont [13/16] 0.0, 128
        %395 = vxpose.xlu0.b32.cont [14/16] 0.0, 128
        %396 = vxpose.xlu0.b32.cont [15/16] 0.0, 128
        %397 = vxpose.xlu0.b32.end [16/16] 0.0, 128
        %v398 = vpop.trf.xlu0
        %v399 = vpop.trf.xlu0
        %v400 = vpop.trf.xlu0
        %v401 = vpop.trf.xlu0
        %v402 = vpop.trf.xlu0
        %v403 = vpop.trf.xlu0
        %v404 = vpop.trf.xlu0
        %v405 = vpop.trf.xlu0
        %v406 = vpop.trf.xlu0
        %v407 = vpop.trf.xlu0
        %v408 = vpop.trf.xlu0
        %v409 = vpop.trf.xlu0
        %v410 = vpop.trf.xlu0
        %v411 = vpop.trf.xlu0
        %v412 = vpop.trf.xlu0
        %v413 = vpop.trf.xlu0
        %414 = vxpose.xlu0.b32.start [1/16] %v378, 128
        %415 = vxpose.xlu0.b32.cont [2/16] 0.0, 128
        %416 = vxpose.xlu0.b32.cont [3/16] 0.0, 128
        %417 = vxpose.xlu0.b32.cont [4/16] 0.0, 128
        %418 = vxpose.xlu0.b32.cont [5/16] 0.0, 128
        %419 = vxpose.xlu0.b32.cont [6/16] 0.0, 128
        %420 = vxpose.xlu0.b32.cont [7/16] 0.0, 128
        %421 = vxpose.xlu0.b32.cont [8/16] 0.0, 128
        %422 = vxpose.xlu0.b32.cont [9/16] 0.0, 128
        %423 = vxpose.xlu0.b32.cont [10/16] 0.0, 128
        %424 = vxpose.xlu0.b32.cont [11/16] 0.0, 128
        %425 = vxpose.xlu0.b32.cont [12/16] 0.0, 128
        %426 = vxpose.xlu0.b32.cont [13/16] 0.0, 128
        %427 = vxpose.xlu0.b32.cont [14/16] 0.0, 128
        %428 = vxpose.xlu0.b32.cont [15/16] 0.0, 128
        %429 = vxpose.xlu0.b32.end [16/16] 0.0, 128
        %v430 = vpop.trf.xlu0
        %v431 = vpop.trf.xlu0
        %v432 = vpop.trf.xlu0
        %v433 = vpop.trf.xlu0
        %v434 = vpop.trf.xlu0
        %v435 = vpop.trf.xlu0
        %v436 = vpop.trf.xlu0
        %v437 = vpop.trf.xlu0
        %v438 = vpop.trf.xlu0
        %v439 = vpop.trf.xlu0
        %v440 = vpop.trf.xlu0
        %v441 = vpop.trf.xlu0
        %v442 = vpop.trf.xlu0
        %v443 = vpop.trf.xlu0
        %v444 = vpop.trf.xlu0
        %v445 = vpop.trf.xlu0
        %446 = vxpose.xlu0.b32.start [1/16] %v361, 128
        %447 = vxpose.xlu0.b32.cont [2/16] 0.0, 128
        %448 = vxpose.xlu0.b32.cont [3/16] 0.0, 128
        %449 = vxpose.xlu0.b32.cont [4/16] 0.0, 128
        %450 = vxpose.xlu0.b32.cont [5/16] 0.0, 128
        %451 = vxpose.xlu0.b32.cont [6/16] 0.0, 128
        %452 = vxpose.xlu0.b32.cont [7/16] 0.0, 128
        %453 = vxpose.xlu0.b32.cont [8/16] 0.0, 128
        %454 = vxpose.xlu0.b32.cont [9/16] 0.0, 128
        %455 = vxpose.xlu0.b32.cont [10/16] 0.0, 128
        %456 = vxpose.xlu0.b32.cont [11/16] 0.0, 128
        %457 = vxpose.xlu0.b32.cont [12/16] 0.0, 128
        %458 = vxpose.xlu0.b32.cont [13/16] 0.0, 128
        %459 = vxpose.xlu0.b32.cont [14/16] 0.0, 128
        %460 = vxpose.xlu0.b32.cont [15/16] 0.0, 128
        %461 = vxpose.xlu0.b32.end [16/16] 0.0, 128
        %v462 = vpop.trf.xlu0
        %v463 = vpop.trf.xlu0
        %v464 = vpop.trf.xlu0
        %v465 = vpop.trf.xlu0
        %v466 = vpop.trf.xlu0
        %v467 = vpop.trf.xlu0
        %v468 = vpop.trf.xlu0
        %v469 = vpop.trf.xlu0
        %v470 = vpop.trf.xlu0
        %v471 = vpop.trf.xlu0
        %v472 = vpop.trf.xlu0
        %v473 = vpop.trf.xlu0
        %v474 = vpop.trf.xlu0
        %v475 = vpop.trf.xlu0
        %v476 = vpop.trf.xlu0
        %v477 = vpop.trf.xlu0
        %478 = vxpose.xlu0.b32.start [1/16] %v379, 128
        %479 = vxpose.xlu0.b32.cont [2/16] 0.0, 128
        %480 = vxpose.xlu0.b32.cont [3/16] 0.0, 128
        %481 = vxpose.xlu0.b32.cont [4/16] 0.0, 128
        %482 = vxpose.xlu0.b32.cont [5/16] 0.0, 128
        %483 = vxpose.xlu0.b32.cont [6/16] 0.0, 128
        %484 = vxpose.xlu0.b32.cont [7/16] 0.0, 128
        %485 = vxpose.xlu0.b32.cont [8/16] 0.0, 128
        %486 = vxpose.xlu0.b32.cont [9/16] 0.0, 128
        %487 = vxpose.xlu0.b32.cont [10/16] 0.0, 128
        %488 = vxpose.xlu0.b32.cont [11/16] 0.0, 128
        %489 = vxpose.xlu0.b32.cont [12/16] 0.0, 128
        %490 = vxpose.xlu0.b32.cont [13/16] 0.0, 128
        %491 = vxpose.xlu0.b32.cont [14/16] 0.0, 128
        %492 = vxpose.xlu0.b32.cont [15/16] 0.0, 128
        %493 = vxpose.xlu0.b32.end [16/16] 0.0, 128
        %v494 = vpop.trf.xlu0
        %v495 = vpop.trf.xlu0
        %v496 = vpop.trf.xlu0
        %v497 = vpop.trf.xlu0
        %v498 = vpop.trf.xlu0
        %v499 = vpop.trf.xlu0
        %v500 = vpop.trf.xlu0
        %v501 = vpop.trf.xlu0
        %v502 = vpop.trf.xlu0
        %v503 = vpop.trf.xlu0
        %v504 = vpop.trf.xlu0
        %v505 = vpop.trf.xlu0
        %v506 = vpop.trf.xlu0
        %v507 = vpop.trf.xlu0
        %v508 = vpop.trf.xlu0
        %v509 = vpop.trf.xlu0
        %510 = vxpose.xlu0.b32.start [1/16] %v370, 128
        %511 = vxpose.xlu0.b32.cont [2/16] 0.0, 128
        %512 = vxpose.xlu0.b32.cont [3/16] 0.0, 128
        %513 = vxpose.xlu0.b32.cont [4/16] 0.0, 128
        %514 = vxpose.xlu0.b32.cont [5/16] 0.0, 128
        %515 = vxpose.xlu0.b32.cont [6/16] 0.0, 128
        %516 = vxpose.xlu0.b32.cont [7/16] 0.0, 128
        %517 = vxpose.xlu0.b32.cont [8/16] 0.0, 128
        %518 = vxpose.xlu0.b32.cont [9/16] 0.0, 128
        %519 = vxpose.xlu0.b32.cont [10/16] 0.0, 128
        %520 = vxpose.xlu0.b32.cont [11/16] 0.0, 128
        %521 = vxpose.xlu0.b32.cont [12/16] 0.0, 128
        %522 = vxpose.xlu0.b32.cont [13/16] 0.0, 128
        %523 = vxpose.xlu0.b32.cont [14/16] 0.0, 128
        %524 = vxpose.xlu0.b32.cont [15/16] 0.0, 128
        %525 = vxpose.xlu0.b32.end [16/16] 0.0, 128
        %v526 = vpop.trf.xlu0
        %v527 = vpop.trf.xlu0
        %v528 = vpop.trf.xlu0
        %v529 = vpop.trf.xlu0
        %v530 = vpop.trf.xlu0
        %v531 = vpop.trf.xlu0
        %v532 = vpop.trf.xlu0
        %v533 = vpop.trf.xlu0
        %v534 = vpop.trf.xlu0
        %v535 = vpop.trf.xlu0
        %v536 = vpop.trf.xlu0
        %v537 = vpop.trf.xlu0
        %v538 = vpop.trf.xlu0
        %v539 = vpop.trf.xlu0
        %v540 = vpop.trf.xlu0
        %v541 = vpop.trf.xlu0
        %542 = vxpose.xlu0.b32.start [1/16] %v380, 128
        %543 = vxpose.xlu0.b32.cont [2/16] 0.0, 128
        %544 = vxpose.xlu0.b32.cont [3/16] 0.0, 128
        %545 = vxpose.xlu0.b32.cont [4/16] 0.0, 128
        %546 = vxpose.xlu0.b32.cont [5/16] 0.0, 128
        %547 = vxpose.xlu0.b32.cont [6/16] 0.0, 128
        %548 = vxpose.xlu0.b32.cont [7/16] 0.0, 128
        %549 = vxpose.xlu0.b32.cont [8/16] 0.0, 128
        %550 = vxpose.xlu0.b32.cont [9/16] 0.0, 128
        %551 = vxpose.xlu0.b32.cont [10/16] 0.0, 128
        %552 = vxpose.xlu0.b32.cont [11/16] 0.0, 128
        %553 = vxpose.xlu0.b32.cont [12/16] 0.0, 128
        %554 = vxpose.xlu0.b32.cont [13/16] 0.0, 128
        %555 = vxpose.xlu0.b32.cont [14/16] 0.0, 128
        %556 = vxpose.xlu0.b32.cont [15/16] 0.0, 128
        %557 = vxpose.xlu0.b32.end [16/16] 0.0, 128
        %v558 = vpop.trf.xlu0
        %v559 = vpop.trf.xlu0
        %v560 = vpop.trf.xlu0
        %v561 = vpop.trf.xlu0
        %v562 = vpop.trf.xlu0
        %v563 = vpop.trf.xlu0
        %v564 = vpop.trf.xlu0
        %v565 = vpop.trf.xlu0
        %v566 = vpop.trf.xlu0
        %v567 = vpop.trf.xlu0
        %v568 = vpop.trf.xlu0
        %v569 = vpop.trf.xlu0
        %v570 = vpop.trf.xlu0
        %v571 = vpop.trf.xlu0
        %v572 = vpop.trf.xlu0
        %v573 = vpop.trf.xlu0
        %574 = vxpose.xlu0.b32.start [1/16] %v377, 128
        %575 = vxpose.xlu0.b32.cont [2/16] 0.0, 128
        %576 = vxpose.xlu0.b32.cont [3/16] 0.0, 128
        %577 = vxpose.xlu0.b32.cont [4/16] 0.0, 128
        %578 = vxpose.xlu0.b32.cont [5/16] 0.0, 128
        %579 = vxpose.xlu0.b32.cont [6/16] 0.0, 128
        %580 = vxpose.xlu0.b32.cont [7/16] 0.0, 128
        %581 = vxpose.xlu0.b32.cont [8/16] 0.0, 128
        %582 = vxpose.xlu0.b32.cont [9/16] 0.0, 128
        %583 = vxpose.xlu0.b32.cont [10/16] 0.0, 128
        %584 = vxpose.xlu0.b32.cont [11/16] 0.0, 128
        %585 = vxpose.xlu0.b32.cont [12/16] 0.0, 128
        %586 = vxpose.xlu0.b32.cont [13/16] 0.0, 128
        %587 = vxpose.xlu0.b32.cont [14/16] 0.0, 128
        %588 = vxpose.xlu0.b32.cont [15/16] 0.0, 128
        %589 = vxpose.xlu0.b32.end [16/16] 0.0, 128
        %v590 = vpop.trf.xlu0
        %v591 = vpop.trf.xlu0
        %v592 = vpop.trf.xlu0
        %v593 = vpop.trf.xlu0
        %v594 = vpop.trf.xlu0
        %v595 = vpop.trf.xlu0
        %v596 = vpop.trf.xlu0
        %v597 = vpop.trf.xlu0
        %v598 = vpop.trf.xlu0
        %v599 = vpop.trf.xlu0
        %v600 = vpop.trf.xlu0
        %v601 = vpop.trf.xlu0
        %v602 = vpop.trf.xlu0
        %v603 = vpop.trf.xlu0
        %v604 = vpop.trf.xlu0
        %v605 = vpop.trf.xlu0
        %606 = vxpose.xlu0.b32.start [1/16] %v381, 128
        %607 = vxpose.xlu0.b32.cont [2/16] 0.0, 128
        %608 = vxpose.xlu0.b32.cont [3/16] 0.0, 128
        %609 = vxpose.xlu0.b32.cont [4/16] 0.0, 128
        %610 = vxpose.xlu0.b32.cont [5/16] 0.0, 128
        %611 = vxpose.xlu0.b32.cont [6/16] 0.0, 128
        %612 = vxpose.xlu0.b32.cont [7/16] 0.0, 128
        %613 = vxpose.xlu0.b32.cont [8/16] 0.0, 128
        %614 = vxpose.xlu0.b32.cont [9/16] 0.0, 128
        %615 = vxpose.xlu0.b32.cont [10/16] 0.0, 128
        %616 = vxpose.xlu0.b32.cont [11/16] 0.0, 128
        %617 = vxpose.xlu0.b32.cont [12/16] 0.0, 128
        %618 = vxpose.xlu0.b32.cont [13/16] 0.0, 128
        %619 = vxpose.xlu0.b32.cont [14/16] 0.0, 128
        %620 = vxpose.xlu0.b32.cont [15/16] 0.0, 128
        %621 = vxpose.xlu0.b32.end [16/16] 0.0, 128
        %v622 = vpop.trf.xlu0
        %v623 = vpop.trf.xlu0
        %v624 = vpop.trf.xlu0
        %v625 = vpop.trf.xlu0
        %v626 = vpop.trf.xlu0
        %v627 = vpop.trf.xlu0
        %v628 = vpop.trf.xlu0
        %v629 = vpop.trf.xlu0
        %v630 = vpop.trf.xlu0
        %v631 = vpop.trf.xlu0
        %v632 = vpop.trf.xlu0
        %v633 = vpop.trf.xlu0
        %v634 = vpop.trf.xlu0
        %v635 = vpop.trf.xlu0
        %v636 = vpop.trf.xlu0
        %v637 = vpop.trf.xlu0
        %v638 = vld [vmem:[%s2] sm:$0xf]
        %v639 = vld [vmem:[%s3] sm:$0x1]
        %v641 = vlaneseq
        %v642 = vshrl.u32 %v641, 7
        %v643 = vsub.s32 0, %v642
        %v644 = vrot.slane %v639, %v643
        %vm646 = vcmask 31744
        %v648 = vsel %vm646, %v398, 0
        %v651 = vsel %vm646, %v399, 0
        %v654 = vsel %vm646, %v430, 0
        %v657 = vsel %vm646, %v431, 0
        %v660 = vsel %vm646, %v462, 0
        %v663 = vsel %vm646, %v463, 0
        %v666 = vsel %vm646, %v494, 0
        %v669 = vsel %vm646, %v495, 0
        %v672 = vsel %vm646, %v526, 0
        %v675 = vsel %vm646, %v527, 0
        %v678 = vsel %vm646, %v558, 0
        %v681 = vsel %vm646, %v559, 0
        %v684 = vsel %vm646, %v590, 0
        %v687 = vsel %vm646, %v591, 0
        %v690 = vsel %vm646, %v622, 0
        %v693 = vsel %vm646, %v623, 0
        %vm695 = vcmask 1043456
        %v697 = vsel %vm695, %v638, 0
        %699 = vmatprep.subr.mxu0 0.0
        %700 = vmatpush1.msra.mxu0 %v697
        %701 = vmatprep.subr.mxu0 0.0
        %702 = vmatpush1.msra.mxu0 0.0
        %703 = vmatprep.subr.mxu0 0.0
        %704 = vmatpush1.msra.mxu0 0.0
        %705 = vmatprep.subr.mxu0 0.0
        %706 = vmatpush1.msra.mxu0 0.0
        %707 = vmatprep.subr.mxu0 0.0
        %708 = vmatpush1.msra.mxu0 0.0
        %709 = vmatprep.subr.mxu0 0.0
        %710 = vmatpush1.msra.mxu0 0.0
        %711 = vmatprep.subr.mxu0 0.0
        %712 = vmatpush1.msra.mxu0 0.0
        %713 = vmatprep.subr.mxu0 0.0
        %714 = vmatpush1.msra.mxu0 0.0
        %715 = vmatprep.subr.mxu0 0.0
        %716 = vmatpush1.msra.mxu0 0.0
        %717 = vmatprep.subr.mxu0 0.0
        %718 = vmatpush1.msra.mxu0 0.0
        %719 = vmatprep.subr.mxu0 0.0
        %720 = vmatpush1.msra.mxu0 0.0
        %721 = vmatprep.subr.mxu0 0.0
        %722 = vmatpush1.msra.mxu0 0.0
        %723 = vmatprep.subr.mxu0 0.0
        %724 = vmatpush1.msra.mxu0 0.0
        %725 = vmatprep.subr.mxu0 0.0
        %726 = vmatpush1.msra.mxu0 0.0
        %727 = vmatprep.subr.mxu0 0.0
        %728 = vmatpush1.msra.mxu0 0.0
        %729 = vmatprep.subr.mxu0 0.0
        %730 = vmatpush1.msra.mxu0 0.0
        %731 = vmatprep.subr.mxu0 0.0
        %732 = vmatpush1.msra.mxu0 0.0
        %733 = vmatprep.subr.mxu0 0.0
        %734 = vmatpush1.msra.mxu0 0.0
        %735 = vmatprep.subr.mxu0 0.0
        %736 = vmatpush1.msra.mxu0 0.0
        %737 = vmatprep.subr.mxu0 0.0
        %738 = vmatpush1.msra.mxu0 0.0
        %739 = vmatprep.subr.mxu0 0.0
        %740 = vmatpush1.msra.mxu0 0.0
        %741 = vmatprep.subr.mxu0 0.0
        %742 = vmatpush1.msra.mxu0 0.0
        %743 = vmatprep.subr.mxu0 0.0
        %744 = vmatpush1.msra.mxu0 0.0
        %745 = vmatprep.subr.mxu0 0.0
        %746 = vmatpush1.msra.mxu0 0.0
        %747 = vmatprep.subr.mxu0 0.0
        %748 = vmatpush1.msra.mxu0 0.0
        %749 = vmatprep.subr.mxu0 0.0
        %750 = vmatpush1.msra.mxu0 0.0
        %751 = vmatprep.subr.mxu0 0.0
        %752 = vmatpush1.msra.mxu0 0.0
        %753 = vmatprep.subr.mxu0 0.0
        %754 = vmatpush1.msra.mxu0 0.0
        %755 = vmatprep.subr.mxu0 0.0
        %756 = vmatpush1.msra.mxu0 0.0
        %757 = vmatprep.subr.mxu0 0.0
        %758 = vmatpush1.msra.mxu0 0.0
        %759 = vmatprep.subr.mxu0 0.0
        %760 = vmatpush1.msra.mxu0 0.0
        %761 = vmatprep.subr.mxu0 0.0
        %762 = vmatpush1.msra.mxu0 0.0
        %763 = vmatprep.mubr.f32.mxu0 0.0
        %764 = vmatmul.mubr.f32.gmra.mrb[0].mxu0 %v648
        %v765 = vpop.f32.mrb[0].mxu0
        %v766 = vadd.f32 %v644, %v765
        %v767 = vpop.f32.mrb[0].mxu0
        %768 = vmatprep.mubr.f32.mxu0 0.0
        %769 = vmatmul.mubr.f32.gmra.mrb[0].mxu0 %v651
        %v770 = vpop.f32.mrb[0].mxu0
        %v771 = vadd.f32 %v644, %v770
        %v772 = vpop.f32.mrb[0].mxu0
        %773 = vmatprep.mubr.f32.mxu0 0.0
        %774 = vmatmul.mubr.f32.gmra.mrb[0].mxu0 %v654
        %v775 = vpop.f32.mrb[0].mxu0
        %v776 = vadd.f32 %v644, %v775
        %v777 = vpop.f32.mrb[0].mxu0
        %778 = vmatprep.mubr.f32.mxu0 0.0
        %779 = vmatmul.mubr.f32.gmra.mrb[0].mxu0 %v657
        %v780 = vpop.f32.mrb[0].mxu0
        %v781 = vadd.f32 %v644, %v780
        %v782 = vpop.f32.mrb[0].mxu0
        %783 = vmatprep.mubr.f32.mxu0 0.0
        %784 = vmatmul.mubr.f32.gmra.mrb[0].mxu0 %v660
        %v785 = vpop.f32.mrb[0].mxu0
        %v786 = vadd.f32 %v644, %v785
        %v787 = vpop.f32.mrb[0].mxu0
        %788 = vmatprep.mubr.f32.mxu0 0.0
        %789 = vmatmul.mubr.f32.gmra.mrb[0].mxu0 %v663
        %v790 = vpop.f32.mrb[0].mxu0
        %v791 = vadd.f32 %v644, %v790
        %v792 = vpop.f32.mrb[0].mxu0
        %793 = vmatprep.mubr.f32.mxu0 0.0
        %794 = vmatmul.mubr.f32.gmra.mrb[0].mxu0 %v666
        %v795 = vpop.f32.mrb[0].mxu0
        %v796 = vadd.f32 %v644, %v795
        %v797 = vpop.f32.mrb[0].mxu0
        %798 = vmatprep.mubr.f32.mxu0 0.0
        %799 = vmatmul.mubr.f32.gmra.mrb[0].mxu0 %v669
        %v800 = vpop.f32.mrb[0].mxu0
        %v801 = vadd.f32 %v644, %v800
        %v802 = vpop.f32.mrb[0].mxu0
        %803 = vmatprep.mubr.f32.mxu0 0.0
        %804 = vmatmul.mubr.f32.gmra.mrb[0].mxu0 %v672
        %v805 = vpop.f32.mrb[0].mxu0
        %v806 = vadd.f32 %v644, %v805
        %v807 = vpop.f32.mrb[0].mxu0
        %808 = vmatprep.mubr.f32.mxu0 0.0
        %809 = vmatmul.mubr.f32.gmra.mrb[0].mxu0 %v675
        %v810 = vpop.f32.mrb[0].mxu0
        %v811 = vadd.f32 %v644, %v810
        %v812 = vpop.f32.mrb[0].mxu0
        %813 = vmatprep.mubr.f32.mxu0 0.0
        %814 = vmatmul.mubr.f32.gmra.mrb[0].mxu0 %v678
        %v815 = vpop.f32.mrb[0].mxu0
        %v816 = vadd.f32 %v644, %v815
        %v817 = vpop.f32.mrb[0].mxu0
        %818 = vmatprep.mubr.f32.mxu0 0.0
        %819 = vmatmul.mubr.f32.gmra.mrb[0].mxu0 %v681
        %v820 = vpop.f32.mrb[0].mxu0
        %v821 = vadd.f32 %v644, %v820
        %v822 = vpop.f32.mrb[0].mxu0
        %823 = vmatprep.mubr.f32.mxu0 0.0
        %824 = vmatmul.mubr.f32.gmra.mrb[0].mxu0 %v684
        %v825 = vpop.f32.mrb[0].mxu0
        %v826 = vadd.f32 %v644, %v825
        %v827 = vpop.f32.mrb[0].mxu0
        %828 = vmatprep.mubr.f32.mxu0 0.0
        %829 = vmatmul.mubr.f32.gmra.mrb[0].mxu0 %v687
        %v830 = vpop.f32.mrb[0].mxu0
        %v831 = vadd.f32 %v644, %v830
        %v832 = vpop.f32.mrb[0].mxu0
        %833 = vmatprep.mubr.f32.mxu0 0.0
        %834 = vmatmul.mubr.f32.gmra.mrb[0].mxu0 %v690
        %v835 = vpop.f32.mrb[0].mxu0
        %v836 = vadd.f32 %v644, %v835
        %v837 = vpop.f32.mrb[0].mxu0
        %838 = vmatprep.mubr.f32.mxu0 0.0
        %839 = vmatmul.mubr.f32.gmra.mrb[0].mxu0 %v693
        %v840 = vpop.f32.mrb[0].mxu0
        %v841 = vadd.f32 %v644, %v840
        %v842 = vpop.f32.mrb[0].mxu0
        %843 = vdwg.mxu0
        %v844 = vmax.f32 %v766, 0.0
        %v845 = vmax.f32 %v771, 0.0
        %v846 = vmax.f32 %v776, 0.0
        %v847 = vmax.f32 %v781, 0.0
        %v848 = vmax.f32 %v786, 0.0
        %v849 = vmax.f32 %v791, 0.0
        %v850 = vmax.f32 %v796, 0.0
        %v851 = vmax.f32 %v801, 0.0
        %v852 = vmax.f32 %v806, 0.0
        %v853 = vmax.f32 %v811, 0.0
        %v854 = vmax.f32 %v816, 0.0
        %v855 = vmax.f32 %v821, 0.0
        %v856 = vmax.f32 %v826, 0.0
        %v857 = vmax.f32 %v831, 0.0
        %v858 = vmax.f32 %v836, 0.0
        %v859 = vmax.f32 %v841, 0.0
        %v860 = vld [vmem:[%s4] sm:$0xff]
        %v861 = vld [vmem:[%s4 + $0x8] sm:$0xff]
        %v862 = vld [vmem:[%s4 + $0x10] sm:$0xff]
        %v863 = vld [vmem:[%s4 + $0x18] sm:$0xff]
        %v864 = vld [vmem:[%s4 + $0x20] sm:$0xff]
        %v865 = vld [vmem:[%s4 + $0x28] sm:$0xff]
        %v866 = vld [vmem:[%s4 + $0x30] sm:$0xff]
        %v867 = vld [vmem:[%s4 + $0x38] sm:$0xff]
        %v868 = vld [vmem:[%s5] sm:$0x1]
        %v870 = vlaneseq
        %v871 = vshrl.u32 %v870, 7
        %v872 = vsub.s32 0, %v871
        %v873 = vrot.slane %v868, %v872
        %vm875 = vcmask 523264
        %v877 = vsel %vm875, %v844, 0
        %v880 = vsel %vm875, %v845, 0
        %v883 = vsel %vm875, %v846, 0
        %v886 = vsel %vm875, %v847, 0
        %v889 = vsel %vm875, %v848, 0
        %v892 = vsel %vm875, %v849, 0
        %v895 = vsel %vm875, %v850, 0
        %v898 = vsel %vm875, %v851, 0
        %v901 = vsel %vm875, %v852, 0
        %v904 = vsel %vm875, %v853, 0
        %v907 = vsel %vm875, %v854, 0
        %v910 = vsel %vm875, %v855, 0
        %v913 = vsel %vm875, %v856, 0
        %v916 = vsel %vm875, %v857, 0
        %v919 = vsel %vm875, %v858, 0
        %v922 = vsel %vm875, %v859, 0
        %924 = vmatprep.subr.mxu0 0.0
        %925 = vmatpush1.msra.mxu0 %v860
        %926 = vmatprep.subr.mxu0 0.0
        %927 = vmatpush1.msra.mxu0 %v861
        %928 = vmatprep.subr.mxu0 0.0
        %929 = vmatpush1.msra.mxu0 %v862
        %930 = vmatprep.subr.mxu0 0.0
        %931 = vmatpush1.msra.mxu0 %v863
        %932 = vmatprep.subr.mxu0 0.0
        %933 = vmatpush1.msra.mxu0 %v864
        %934 = vmatprep.subr.mxu0 0.0
        %935 = vmatpush1.msra.mxu0 %v865
        %936 = vmatprep.subr.mxu0 0.0
        %937 = vmatpush1.msra.mxu0 %v866
        %938 = vmatprep.subr.mxu0 0.0
        %939 = vmatpush1.msra.mxu0 %v867
        %940 = vmatprep.subr.mxu0 0.0
        %941 = vmatpush1.msra.mxu0 0.0
        %942 = vmatprep.subr.mxu0 0.0
        %943 = vmatpush1.msra.mxu0 0.0
        %944 = vmatprep.subr.mxu0 0.0
        %945 = vmatpush1.msra.mxu0 0.0
        %946 = vmatprep.subr.mxu0 0.0
        %947 = vmatpush1.msra.mxu0 0.0
        %948 = vmatprep.subr.mxu0 0.0
        %949 = vmatpush1.msra.mxu0 0.0
        %950 = vmatprep.subr.mxu0 0.0
        %951 = vmatpush1.msra.mxu0 0.0
        %952 = vmatprep.subr.mxu0 0.0
        %953 = vmatpush1.msra.mxu0 0.0
        %954 = vmatprep.subr.mxu0 0.0
        %955 = vmatpush1.msra.mxu0 0.0
        %956 = vmatprep.subr.mxu0 0.0
        %957 = vmatpush1.msra.mxu0 0.0
        %958 = vmatprep.subr.mxu0 0.0
        %959 = vmatpush1.msra.mxu0 0.0
        %960 = vmatprep.subr.mxu0 0.0
        %961 = vmatpush1.msra.mxu0 0.0
        %962 = vmatprep.subr.mxu0 0.0
        %963 = vmatpush1.msra.mxu0 0.0
        %964 = vmatprep.subr.mxu0 0.0
        %965 = vmatpush1.msra.mxu0 0.0
        %966 = vmatprep.subr.mxu0 0.0
        %967 = vmatpush1.msra.mxu0 0.0
        %968 = vmatprep.subr.mxu0 0.0
        %969 = vmatpush1.msra.mxu0 0.0
        %970 = vmatprep.subr.mxu0 0.0
        %971 = vmatpush1.msra.mxu0 0.0
        %972 = vmatprep.subr.mxu0 0.0
        %973 = vmatpush1.msra.mxu0 0.0
        %974 = vmatprep.subr.mxu0 0.0
        %975 = vmatpush1.msra.mxu0 0.0
        %976 = vmatprep.subr.mxu0 0.0
        %977 = vmatpush1.msra.mxu0 0.0
        %978 = vmatprep.subr.mxu0 0.0
        %979 = vmatpush1.msra.mxu0 0.0
        %980 = vmatprep.subr.mxu0 0.0
        %981 = vmatpush1.msra.mxu0 0.0
        %982 = vmatprep.subr.mxu0 0.0
        %983 = vmatpush1.msra.mxu0 0.0
        %984 = vmatprep.subr.mxu0 0.0
        %985 = vmatpush1.msra.mxu0 0.0
        %986 = vmatprep.subr.mxu0 0.0
        %987 = vmatpush1.msra.mxu0 0.0
        %988 = vmatprep.mubr.f32.mxu0 0.0
        %989 = vmatmul.mubr.f32.gmra.mrb[0].mxu0 %v877
        %v990 = vpop.f32.mrb[0].mxu0
        %v991 = vadd.f32 %v873, %v990
        %v992 = vpop.f32.mrb[0].mxu0
        %993 = vmatprep.mubr.f32.mxu0 0.0
        %994 = vmatmul.mubr.f32.gmra.mrb[0].mxu0 %v880
        %v995 = vpop.f32.mrb[0].mxu0
        %v996 = vadd.f32 %v873, %v995
        %v997 = vpop.f32.mrb[0].mxu0
        %998 = vmatprep.mubr.f32.mxu0 0.0
        %999 = vmatmul.mubr.f32.gmra.mrb[0].mxu0 %v883
        %v1000 = vpop.f32.mrb[0].mxu0
        %v1001 = vadd.f32 %v873, %v1000
        %v1002 = vpop.f32.mrb[0].mxu0
        %1003 = vmatprep.mubr.f32.mxu0 0.0
        %1004 = vmatmul.mubr.f32.gmra.mrb[0].mxu0 %v886
        %v1005 = vpop.f32.mrb[0].mxu0
        %v1006 = vadd.f32 %v873, %v1005
        %v1007 = vpop.f32.mrb[0].mxu0
        %1008 = vmatprep.mubr.f32.mxu0 0.0
        %1009 = vmatmul.mubr.f32.gmra.mrb[0].mxu0 %v889
        %v1010 = vpop.f32.mrb[0].mxu0
        %v1011 = vadd.f32 %v873, %v1010
        %v1012 = vpop.f32.mrb[0].mxu0
        %1013 = vmatprep.mubr.f32.mxu0 0.0
        %1014 = vmatmul.mubr.f32.gmra.mrb[0].mxu0 %v892
        %v1015 = vpop.f32.mrb[0].mxu0
        %v1016 = vadd.f32 %v873, %v1015
        %v1017 = vpop.f32.mrb[0].mxu0
        %1018 = vmatprep.mubr.f32.mxu0 0.0
        %1019 = vmatmul.mubr.f32.gmra.mrb[0].mxu0 %v895
        %v1020 = vpop.f32.mrb[0].mxu0
        %v1021 = vadd.f32 %v873, %v1020
        %v1022 = vpop.f32.mrb[0].mxu0
        %1023 = vmatprep.mubr.f32.mxu0 0.0
        %1024 = vmatmul.mubr.f32.gmra.mrb[0].mxu0 %v898
        %v1025 = vpop.f32.mrb[0].mxu0
        %v1026 = vadd.f32 %v873, %v1025
        %v1027 = vpop.f32.mrb[0].mxu0
        %1028 = vmatprep.mubr.f32.mxu0 0.0
        %1029 = vmatmul.mubr.f32.gmra.mrb[0].mxu0 %v901
        %v1030 = vpop.f32.mrb[0].mxu0
        %v1031 = vadd.f32 %v873, %v1030
        %v1032 = vpop.f32.mrb[0].mxu0
        %1033 = vmatprep.mubr.f32.mxu0 0.0
        %1034 = vmatmul.mubr.f32.gmra.mrb[0].mxu0 %v904
        %v1035 = vpop.f32.mrb[0].mxu0
        %v1036 = vadd.f32 %v873, %v1035
        %v1037 = vpop.f32.mrb[0].mxu0
        %1038 = vmatprep.mubr.f32.mxu0 0.0
        %1039 = vmatmul.mubr.f32.gmra.mrb[0].mxu0 %v907
        %v1040 = vpop.f32.mrb[0].mxu0
        %v1041 = vadd.f32 %v873, %v1040
        %v1042 = vpop.f32.mrb[0].mxu0
        %1043 = vmatprep.mubr.f32.mxu0 0.0
        %1044 = vmatmul.mubr.f32.gmra.mrb[0].mxu0 %v910
        %v1045 = vpop.f32.mrb[0].mxu0
        %v1046 = vadd.f32 %v873, %v1045
        %v1047 = vpop.f32.mrb[0].mxu0
        %1048 = vmatprep.mubr.f32.mxu0 0.0
        %1049 = vmatmul.mubr.f32.gmra.mrb[0].mxu0 %v913
        %v1050 = vpop.f32.mrb[0].mxu0
        %v1051 = vadd.f32 %v873, %v1050
        %v1052 = vpop.f32.mrb[0].mxu0
        %1053 = vmatprep.mubr.f32.mxu0 0.0
        %1054 = vmatmul.mubr.f32.gmra.mrb[0].mxu0 %v916
        %v1055 = vpop.f32.mrb[0].mxu0
        %v1056 = vadd.f32 %v873, %v1055
        %v1057 = vpop.f32.mrb[0].mxu0
        %1058 = vmatprep.mubr.f32.mxu0 0.0
        %1059 = vmatmul.mubr.f32.gmra.mrb[0].mxu0 %v919
        %v1060 = vpop.f32.mrb[0].mxu0
        %v1061 = vadd.f32 %v873, %v1060
        %v1062 = vpop.f32.mrb[0].mxu0
        %1063 = vmatprep.mubr.f32.mxu0 0.0
        %1064 = vmatmul.mubr.f32.gmra.mrb[0].mxu0 %v922
        %v1065 = vpop.f32.mrb[0].mxu0
        %v1066 = vadd.f32 %v873, %v1065
        %v1067 = vpop.f32.mrb[0].mxu0
        %1068 = vdwg.mxu0
        %v1069 = vmax.f32 %v991, 0.0
        %v1070 = vmax.f32 %v996, 0.0
        %v1071 = vmax.f32 %v1001, 0.0
        %v1072 = vmax.f32 %v1006, 0.0
        %v1073 = vmax.f32 %v1011, 0.0
        %v1074 = vmax.f32 %v1016, 0.0
        %v1075 = vmax.f32 %v1021, 0.0
        %v1076 = vmax.f32 %v1026, 0.0
        %v1077 = vmax.f32 %v1031, 0.0
        %v1078 = vmax.f32 %v1036, 0.0
        %v1079 = vmax.f32 %v1041, 0.0
        %v1080 = vmax.f32 %v1046, 0.0
        %v1081 = vmax.f32 %v1051, 0.0
        %v1082 = vmax.f32 %v1056, 0.0
        %v1083 = vmax.f32 %v1061, 0.0
        %v1084 = vmax.f32 %v1066, 0.0
        %v1085 = vld [vmem:[%s296] sm:$0xff]
        %v1087 = vcombine.high %v1085, %v1085
        %v1089 = vunpack.c.l.s4 1966171168
        %v1090 = vunpack.c.0.s8 %v1089
        %v1091 = vlaneseq
        %v1092 = vshrl.u32 %v1091, 7
        %v1093 = vsub.s32 %v1090, %v1092
        %v1094 = vrot.slane %v1085, %v1093
        %v1096 = vunpack.c.l.s4 1966171168
        %v1097 = vunpack.c.0.s8 %v1096
        %v1098 = vlaneseq
        %v1099 = vshrl.u32 %v1098, 7
        %v1100 = vsub.s32 %v1097, %v1099
        %v1101 = vrot.slane %v1087, %v1100
        %v1102 = vcombine.high %v1094, %v1094
        %v1103 = vcombine.high %v1101, %v1101
        %v1105 = vunpack.c.l.s4 1966171168
        %v1106 = vunpack.c.0.s8 %v1105
        %v1107 = vlaneseq
        %v1108 = vshrl.u32 %v1107, 7
        %v1109 = vsub.s32 %v1106, %v1108
        %v1110 = vrot.slane %v1094, %v1109
        %v1112 = vunpack.c.l.s4 1966171168
        %v1113 = vunpack.c.0.s8 %v1112
        %v1114 = vlaneseq
        %v1115 = vshrl.u32 %v1114, 7
        %v1116 = vsub.s32 %v1113, %v1115
        %v1117 = vrot.slane %v1101, %v1116
        %v1119 = vunpack.c.l.s4 1966171168
        %v1120 = vunpack.c.0.s8 %v1119
        %v1121 = vlaneseq
        %v1122 = vshrl.u32 %v1121, 7
        %v1123 = vsub.s32 %v1120, %v1122
        %v1124 = vrot.slane %v1102, %v1123
        %v1126 = vunpack.c.l.s4 1966171168
        %v1127 = vunpack.c.0.s8 %v1126
        %v1128 = vlaneseq
        %v1129 = vshrl.u32 %v1128, 7
        %v1130 = vsub.s32 %v1127, %v1129
        %v1131 = vrot.slane %v1103, %v1130
        %v1132 = vcombine.high %v1110, %v1110
        %v1133 = vcombine.high %v1117, %v1117
        %v1134 = vcombine.high %v1124, %v1124
        %v1135 = vcombine.high %v1131, %v1131
        %v1136 = vlaneseq
        %v1137 = vshrl.u32 %v1136, 7
        %v1138 = vsub.s32 0, %v1137
        %v1139 = vrot.slane %v1110, %v1138
        %v1140 = vlaneseq
        %v1141 = vshrl.u32 %v1140, 7
        %v1142 = vsub.s32 0, %v1141
        %v1143 = vrot.slane %v1124, %v1142
        %v1144 = vlaneseq
        %v1145 = vshrl.u32 %v1144, 7
        %v1146 = vsub.s32 0, %v1145
        %v1147 = vrot.slane %v1132, %v1146
        %v1148 = vlaneseq
        %v1149 = vshrl.u32 %v1148, 7
        %v1150 = vsub.s32 0, %v1149
        %v1151 = vrot.slane %v1134, %v1150
        %v1152 = vlaneseq
        %v1153 = vshrl.u32 %v1152, 7
        %v1154 = vsub.s32 0, %v1153
        %v1155 = vrot.slane %v1117, %v1154
        %v1156 = vlaneseq
        %v1157 = vshrl.u32 %v1156, 7
        %v1158 = vsub.s32 0, %v1157
        %v1159 = vrot.slane %v1131, %v1158
        %v1160 = vlaneseq
        %v1161 = vshrl.u32 %v1160, 7
        %v1162 = vsub.s32 0, %v1161
        %v1163 = vrot.slane %v1133, %v1162
        %v1164 = vlaneseq
        %v1165 = vshrl.u32 %v1164, 7
        %v1166 = vsub.s32 0, %v1165
        %v1167 = vrot.slane %v1135, %v1166
        %1168 = vset.pattern.permute.xlu0 0
        %1169 = vperm.xlu0 %1168, %v1139
        %v1170 = vpop.permute.xlu0 %1169
        %1172 = vset.pattern.permute.xlu0 0
        %1173 = vperm.xlu0 %1172, %v1143
        %v1174 = vpop.permute.xlu0 %1173
        %1176 = vset.pattern.permute.xlu0 0
        %1177 = vperm.xlu0 %1176, %v1147
        %v1178 = vpop.permute.xlu0 %1177
        %1180 = vset.pattern.permute.xlu0 0
        %1181 = vperm.xlu0 %1180, %v1151
        %v1182 = vpop.permute.xlu0 %1181
        %1184 = vset.pattern.permute.xlu0 0
        %1185 = vperm.xlu0 %1184, %v1155
        %v1186 = vpop.permute.xlu0 %1185
        %1188 = vset.pattern.permute.xlu0 0
        %1189 = vperm.xlu0 %1188, %v1159
        %v1190 = vpop.permute.xlu0 %1189
        %1192 = vset.pattern.permute.xlu0 0
        %1193 = vperm.xlu0 %1192, %v1163
        %v1194 = vpop.permute.xlu0 %1193
        %1196 = vset.pattern.permute.xlu0 0
        %1197 = vperm.xlu0 %1196, %v1167
        %v1198 = vpop.permute.xlu0 %1197
        %v1200 = vmul.f32 %v1069, %v1170
        %v1201 = vmul.f32 %v1070, %v1170
        %v1202 = vmul.f32 %v1071, %v1174
        %v1203 = vmul.f32 %v1072, %v1174
        %v1204 = vmul.f32 %v1073, %v1178
        %v1205 = vmul.f32 %v1074, %v1178
        %v1206 = vmul.f32 %v1075, %v1182
        %v1207 = vmul.f32 %v1076, %v1182
        %v1208 = vmul.f32 %v1077, %v1186
        %v1209 = vmul.f32 %v1078, %v1186
        %v1210 = vmul.f32 %v1079, %v1190
        %v1211 = vmul.f32 %v1080, %v1190
        %v1212 = vmul.f32 %v1081, %v1194
        %v1213 = vmul.f32 %v1082, %v1194
        %v1214 = vmul.f32 %v1083, %v1198
        %v1215 = vmul.f32 %v1084, %v1198
        %v1216 = vld [vmem:[%s282] sm:$0x1]
        %vm1217 = vcmask 261120
        %v1218 = vsel %vm1217, %v1200, 0.0
        %v1219 = vsel %vm1217, %v1201, 0.0
        %v1220 = vadd.f32 %v1218, %v1219
        %v1221 = vsel %vm1217, %v1202, 0.0
        %v1222 = vadd.f32 %v1220, %v1221
        %v1223 = vsel %vm1217, %v1203, 0.0
        %v1224 = vadd.f32 %v1222, %v1223
        %v1225 = vsel %vm1217, %v1204, 0.0
        %v1226 = vadd.f32 %v1224, %v1225
        %v1227 = vsel %vm1217, %v1205, 0.0
        %v1228 = vadd.f32 %v1226, %v1227
        %v1229 = vsel %vm1217, %v1206, 0.0
        %v1230 = vadd.f32 %v1228, %v1229
        %v1231 = vsel %vm1217, %v1207, 0.0
        %v1232 = vadd.f32 %v1230, %v1231
        %v1233 = vsel %vm1217, %v1208, 0.0
        %v1234 = vadd.f32 %v1232, %v1233
        %v1235 = vsel %vm1217, %v1209, 0.0
        %v1236 = vadd.f32 %v1234, %v1235
        %v1237 = vsel %vm1217, %v1210, 0.0
        %v1238 = vadd.f32 %v1236, %v1237
        %v1239 = vsel %vm1217, %v1211, 0.0
        %v1240 = vadd.f32 %v1238, %v1239
        %v1241 = vsel %vm1217, %v1212, 0.0
        %v1242 = vadd.f32 %v1240, %v1241
        %v1243 = vsel %vm1217, %v1213, 0.0
        %v1244 = vadd.f32 %v1242, %v1243
        %v1245 = vsel %vm1217, %v1214, 0.0
        %v1246 = vadd.f32 %v1244, %v1245
        %v1247 = vsel %vm1217, %v1215, 0.0
        %v1248 = vadd.f32 %v1246, %v1247
        %v1249 = vrot.slane %v1248, 4
        %v1250 = vadd.f32 %v1248, %v1249
        %v1251 = vrot.slane %v1250, 2
        %v1252 = vadd.f32 %v1250, %v1251
        %v1253 = vrot.slane %v1252, 1
        %v1254 = vadd.f32 %v1252, %v1253
        %v1255 = vadd.f32 %v1216, %v1254
        %vm1256 = vcmask 253952
        %1257 = vst.msk [vmem:[%s282] sm:$0x1] %vm1256, %v1255
        %s1258 = sand.u32 %s180, 1
        %s1259 = scalar_lea.sflag [#allocation3], %s1258
        %s1260 = sand.u32 %s180, 1
        %s1261 = scalar_lea.vmem [#allocation2], %s1260
        // Predicated region
        $region49: #{tpu_custom_call.1} parent=43 // pred_check
          %p1262 = pneg %p190
        $region50: #{tpu_custom_call.1} parent=43 // pred_check_branch
          %1264 = sbr.rel (%p1262) target = $region52
        $region51: #{tpu_custom_call.1} parent=43 // pred_region
          %s1266 = ssub.s32 16, 16
          %1267 = vsyncadd %s1259, %s1266
          %s1268 = smul.addr %s24, 16
          %s1269 = scalar_lea.hbm %s6, %s1268
          %s1271 = sshll.u32 %s1261, 4
          %s1272 = int_to_ptr.vmem [resolvable:$true] %s1271
          %1274 = dma.vmem_to_hbm [thread:$0]  %s1272, 16, %s1269, %s1259
        $region52: #{tpu_custom_call.1} parent=43 // pred_fallthru
          _
      $region44: #{tpu_custom_call.1} parent=5 // pred_fallthru
        _
      %p1275 = scmp.le.s32.totalorder 2, %s15
      // Predicated region
      $region53: #{tpu_custom_call.1} parent=5 // pred_check
        %p1276 = pneg %p1275
      $region54: #{tpu_custom_call.1} parent=5 // pred_check_branch
        %1278 = sbr.rel (%p1276) target = $region56
      $region55: #{tpu_custom_call.1} parent=5 // pred_region
        %s1279 = ssub.s32 %s15, 2
        // Predicated region
        $region57: #{tpu_custom_call.1} parent=55 // pred_check
          %p1280 = pneg %p196
        $region58: #{tpu_custom_call.1} parent=55 // pred_check_branch
          %1282 = sbr.rel (%p1280) target = $region60
        $region59: #{tpu_custom_call.1} parent=55 // pred_region
          %s1283 = sand.u32 %s181, 1
          %s1284 = scalar_lea.sflag [#allocation3], %s1283
          %s1285 = sand.u32 %s181, 1
          %s1286 = scalar_lea.vmem [#allocation2], %s1285
          %1287 = dma.done %s1284, 16
        $region60: #{tpu_custom_call.1} parent=55 // pred_fallthru
          _
      $region56: #{tpu_custom_call.1} parent=5 // pred_fallthru
        _
    $region6: #{tpu_custom_call.1} parent=1 // loop_footer
      %s19 = sadd.s32 1, %s15
    $region7: #{tpu_custom_call.1} parent=1 // loop_footer_branch
      %14 = sbr.rel target = $region3
    $region8: #{tpu_custom_call.1} parent=1 // loop_exit
      _
    %1288 = vsyncpa [#allocation3], 1
    %s1289 = scalar_lea.sflag [#allocation3], 1
    %1290 = vsyncpa %s1289, 1

</llo_original>
